<compile_context>
chip_gen: v5e
topology: v5e:2x2
jax: 0.10.0
libtpu: 0.0.40
codegen_flags: <defaults>
</compile_context>

<pallas_src>
import functools
import math

import jax
import jax.numpy as jnp
from jax.experimental import pallas as pl
from jax.experimental.pallas import tpu as pltpu

LANE = 128
MAX_WIDTH = 2048  # lane-dense last dim: 16 vregs -> long unmasked vst streams


def _round_up(x, m):
    return (x + m - 1) // m * m


def _validity(t, null_is_nan, null_val):
    if null_is_nan:
        return jnp.logical_not(jnp.isnan(t))
    return t != jnp.asarray(null_val, dtype=t.dtype)


# ----------------------------- kernel --------------------------------------- #

def _mask_scale_kernel(scale_ref, t_ref, o_ref, *, null_is_nan, null_val):
    """out = scale where valid else 0 (scale precomputed; pure DMA-limited)."""
    valid = _validity(t_ref[...], null_is_nan, null_val)
    o_ref[...] = jnp.where(valid, scale_ref[0, 0], jnp.float32(0.0))


# ----------------------------- tiling policy --------------------------------- #

def _tpu_budgets():
    """(block_out_bytes_target, vmem_limit_bytes) per TPU generation."""
    vmem_cap = None
    try:
        info = pltpu.get_tpu_info()
        vmem_cap = getattr(info, "vmem_capacity_bytes", None)
    except Exception:
        vmem_cap = None
    if vmem_cap is not None and vmem_cap <= 64 * 1024 * 1024:
        # v7x: 64 MiB physical VMEM, 3.2 TB/s HBM.
        return 4 * 1024 * 1024, 40 * 1024 * 1024
    if vmem_cap is not None:
        # v5e / v6e: 128 MiB physical VMEM -> larger blocks amortize step cost.
        return 8 * 1024 * 1024, 64 * 1024 * 1024
    # Unknown generation: conservative values safe everywhere.
    return 4 * 1024 * 1024, 40 * 1024 * 1024


def _layout(n, in_itemsize, block_out_bytes):
    """Pick (rows, width, block_rows, pad) for a lane-dense 2-D slab.

    Prefers a width that divides n exactly (no host-side pad copy); pads only
    when n is ragged (n % 128 != 0).
    """
    if n % LANE == 0:
        m = n // LANE
        d = next(d for d in range(min(MAX_WIDTH // LANE, m), 0, -1) if m % d == 0)
        width = d * LANE
        pad = 0
    else:
        width = min(MAX_WIDTH, _round_up(n, LANE))
        pad = _round_up(n, width) - n
    rows = (n + pad) // width

    # Sublane packing of the *input* dtype (f32:8, bf16:16, int8/fp8:32);
    # the f32 output's 8-row packing divides all of these.
    packing = max(8, 32 // int(in_itemsize))

    # Block height sized by output bytes (input block is native-width, smaller).
    tgt_rows = max(packing, (block_out_bytes // (4 * width)) // packing * packing)
    if rows > tgt_rows:
        block_rows = tgt_rows
    elif rows >= 2 * packing:
        # Ensure >= 2 grid steps so the parallel axis can use both v7x cores.
        block_rows = _round_up(pl.cdiv(rows, 2), packing)
    else:
        block_rows = rows  # full-dim block (exempt from (8,128) divisibility)
    return rows, width, block_rows, pad


# ----------------------------- wrapper --------------------------------------- #

def compute_mask(targets: jax.Array, null_val: float = 0.0) -> jax.Array:
    """Pallas implementation of MaskedLoss.compute_mask (float32 output)."""
    null_is_nan = bool(math.isnan(null_val))
    orig_shape = targets.shape
    n = int(targets.size)
    in_itemsize = jnp.dtype(targets.dtype).itemsize

    # Exact validity count (int32 sum), delegated to XLA's roofline reduction.
    # scale = 1/mean reproduces the reference's elementwise rounding for
    # valid elements; count == 0 folds the 0/0 -> 0 fixup into scale = 0.
    valid_count = jnp.sum(
        _validity(targets, null_is_nan, null_val).astype(jnp.int32))
    mean = valid_count.astype(jnp.float32) / jnp.float32(n)
    scale = jnp.where(valid_count > 0,
                      jnp.float32(1.0) / mean,
                      jnp.float32(0.0)).reshape(1, 1)

    block_out_bytes, vmem_limit = _tpu_budgets()
    rows, width, block_rows, pad = _layout(n, in_itemsize, block_out_bytes)

    flat = targets.reshape(-1)
    if pad:  # only for ragged n (n % 128 != 0); pad value is irrelevant
        flat = jnp.pad(flat, (0, pad))
    t2d = flat.reshape(rows, width)

    grid = (pl.cdiv(rows, block_rows),)
    cost = pl.CostEstimate(
        flops=n,
        transcendentals=0,
        bytes_accessed=rows * width * (in_itemsize + 4) + 8,
    )

    mask2d = pl.pallas_call(
        functools.partial(_mask_scale_kernel,
                          null_is_nan=null_is_nan, null_val=null_val),
        out_shape=jax.ShapeDtypeStruct((rows, width), jnp.float32),
        grid_spec=pltpu.PrefetchScalarGridSpec(
            num_scalar_prefetch=0,
            grid=grid,
            in_specs=[
                pl.BlockSpec(memory_space=pltpu.MemorySpace.SMEM),    # (1,1) scale
                pl.BlockSpec((block_rows, width), lambda i: (i, 0)),  # targets tile
            ],
            out_specs=pl.BlockSpec((block_rows, width), lambda i: (i, 0)),
        ),
        compiler_params=pltpu.CompilerParams(
            dimension_semantics=("parallel",),   # independent blocks -> megacore
            vmem_limit_bytes=vmem_limit,
        ),
        cost_estimate=cost,
    )(scale, t2d)

    mask = mask2d.reshape(-1)
    if pad:
        mask = mask[:n]
    return mask.reshape(orig_shape)


class MaskedLoss:
    """JAX/Pallas counterpart of the PyTorch MaskedLoss (forward is abstract)."""

    def __init__(self, null_val: float = 0.0):
        self.null_val = null_val

    def forward(self, outputs, targets):
        raise NotImplementedError()

    def compute_mask(self, targets: jax.Array) -> jax.Array:
        return compute_mask(targets, self.null_val)


# ----------------------------- reference & main ------------------------------ #

def _compute_mask_ref(targets, null_val=0.0):
    if math.isnan(null_val):
        mask = jnp.logical_not(jnp.isnan(targets))
    else:
        mask = targets != null_val
    mask = mask.astype(jnp.float32)
    mask = mask / jnp.mean(mask)
    return jnp.where(jnp.isnan(mask), jnp.float32(0.0), mask)


if __name__ == "__main__":
    # NCHW example input with ~30% entries exactly equal to null_val (0.0).
    key = jax.random.PRNGKey(0)
    x = jax.random.normal(key, (2, 4, 16, 16), dtype=jnp.float32)
    drop = jax.random.uniform(jax.random.PRNGKey(1), (2, 4, 16, 16)) < 0.3
    targets = jnp.where(drop, jnp.float32(0.0), x)

    loss_mod = MaskedLoss(null_val=0.0)
    mask = jax.block_until_ready(loss_mod.compute_mask(targets))
    ref = _compute_mask_ref(targets, 0.0)
    assert mask.shape == targets.shape and mask.dtype == jnp.float32
    assert jnp.allclose(mask, ref, atol=1e-5, rtol=1e-5)

    # NaN-null_val path.
    y = jax.random.normal(jax.random.PRNGKey(2), (4, 8, 32), dtype=jnp.float32)
    dropn = jax.random.uniform(jax.random.PRNGKey(3), (4, 8, 32)) < 0.25
    targets_nan = jnp.where(dropn, jnp.float32(jnp.nan), y)
    mask_nan = jax.block_until_ready(compute_mask(targets_nan, float("nan")))
    ref_nan = _compute_mask_ref(targets_nan, float("nan"))
    assert jnp.allclose(mask_nan, ref_nan, atol=1e-5, rtol=1e-5)

    print("KERNEL_OK")
</pallas_src>

<mosaic_0001>
module attributes {stable_mosaic.version = 11 : i64} {
  func.func @_mask_scale_kernel(%arg0: i32, %arg1: memref<1x1xf32, #tpu.memory_space<smem>>, %arg2: memref<1x2048xf32, #tpu.memory_space<vmem>>, %arg3: memref<1x2048xf32, #tpu.memory_space<vmem>>) attributes {dimension_semantics = [#tpu.dimension_semantics<parallel>], iteration_bounds = array<i64: 1>, scalar_prefetch = 0 : i64, scratch_operands = 0 : i64, tpu.core_type = #tpu.core_type<tc>, window_params = [{transform_indices = @transform_0, window_bounds = array<i64: 1, 1>}, {transform_indices = @transform_1, window_bounds = array<i64: 1, 2048>}, {transform_indices = @transform_2, window_bounds = array<i64: 1, 2048>}]} {
    %c0 = arith.constant 0 : index
    %c0_0 = arith.constant 0 : index
    %0 = vector.load %arg2[%c0, %c0_0] : memref<1x2048xf32, #tpu.memory_space<vmem>>, vector<1x2048xf32>
    %cst = arith.constant 0.000000e+00 : f32
    %1 = vector.broadcast %cst : f32 to vector<1x2048xf32>
    %2 = arith.cmpf one, %0, %1 : vector<1x2048xf32>
    %c0_1 = arith.constant 0 : index
    %c0_2 = arith.constant 0 : index
    %3 = memref.load %arg1[%c0_1, %c0_2] : memref<1x1xf32, #tpu.memory_space<smem>>
    %cst_3 = arith.constant 0.000000e+00 : f32
    %4 = vector.broadcast %3 : f32 to vector<1x2048xf32>
    %5 = vector.broadcast %cst_3 : f32 to vector<1x2048xf32>
    %6 = arith.select %2, %4, %5 : vector<1x2048xi1>, vector<1x2048xf32>
    %c0_4 = arith.constant 0 : index
    %c0_5 = arith.constant 0 : index
    %7 = vector.load %arg3[%c0_4, %c0_5] : memref<1x2048xf32, #tpu.memory_space<vmem>>, vector<1x2048xf32>
    tpu.vector_store %arg3[%c0_4, %c0_5], %6 {strides = array<i32>} : memref<1x2048xf32, #tpu.memory_space<vmem>>, vector<1x2048xf32>,
    return
  }
  func.func @transform_0(%arg0: i32) -> (i32, i32) {
    %c0_i32 = arith.constant 0 : i32
    %c0_i32_0 = arith.constant 0 : i32
    %c0_i32_1 = arith.constant 0 : i32
    return %c0_i32, %c0_i32_0 : i32, i32
  }
  func.func @transform_1(%arg0: i32) -> (i32, i32) {
    %c0_i32 = arith.constant 0 : i32
    %c0_i32_0 = arith.constant 0 : i32
    return %arg0, %c0_i32 : i32, i32
  }
  func.func @transform_2(%arg0: i32) -> (i32, i32) {
    %c0_i32 = arith.constant 0 : i32
    %c0_i32_0 = arith.constant 0 : i32
    return %arg0, %c0_i32 : i32, i32
  }
}

</mosaic_0001>

<llo_original>
// kernel: tpu_custom_call.1
$region0: #{tpu_custom_call.1}
  #allocation0 [shape = 'u32[]', space=smem, size = 0x4, offset = 0x4, fixed_abs, tag = 'smem constant byte address 0x4 - core index']
  #allocation1 [shape = 'u32[72,128]{1,0:T(1,128)}', space=vmem, size = 0x9000, scoped, tag = 'internal scratch']
  #allocation2 [shape = 'f32[1,1]{1,0:T(1,128)S(6)}', space=smem, size = 0x200, scoped, tag = 'scoped memory for tpu_custom_call.1']
  %s0 = inlined_call_operand.<no memory space> [shape: f32[1,1], index: 0, kind: input, shape index: {}]
  %s1 = inlined_call_operand.hbm [shape: f32[1,2048], index: 1, kind: input, shape index: {}]
  %s2 = inlined_call_operand.hbm [shape: f32[1,2048], index: 2, kind: output, shape index: {}]
  %s3 = sld [smem:[#allocation0]]
  $region22: #{tpu_custom_call.1} parent=0
    _
  %s5 = ssub.s32 1, %s3
  %s6 = scalar_select 0, %s5, %s3
  %7 = sst [smem:[#allocation2]] %s0
  $region1: #{tpu_custom_call.1} parent=0
    #allocation3 [shape = 'u8[8192]{0}', space=vmem, size = 0x2000, scoped, tag = 'input window, operand 1, single buffered']
    #allocation4 [shape = 's32[1]{0}', space=sflag, size = 0x4, scoped, tag = 'scoped memory for tpu_custom_call.1']
    #allocation5 [shape = 's32[1]{0}', space=sflag, size = 0x4, scoped, tag = 'scoped memory for tpu_custom_call.1']
    #allocation6 [shape = 'u8[8192]{0}', space=vmem, size = 0x2000, scoped, tag = 'output window, operand 0, single buffered']
    %8 = vsyncpa [#allocation4], 0
    %9 = vsyncpa [#allocation5], 0
    // Predicated region
    $region2: #{tpu_custom_call.1} parent=1 // pred_check
      _
    $region3: #{tpu_custom_call.1} parent=1 // pred_check_branch
      %11 = sbr.rel (0) target = $region5
    $region4: #{tpu_custom_call.1} parent=1 // pred_region
      _
    $region5: #{tpu_custom_call.1} parent=1 // pred_fallthru
      _
    // Predicated region
    $region6: #{tpu_custom_call.1} parent=1 // pred_check
      _
    $region7: #{tpu_custom_call.1} parent=1 // pred_check_branch
      %13 = sbr.rel (0) target = $region9
    $region8: #{tpu_custom_call.1} parent=1 // pred_region
      %15 = vsyncadd [#allocation4], 0
      %s17 = sshll.u32 %s1, 4
      %s18 = int_to_ptr.hbm [resolvable:$true] %s17
      %s19 = sshll.u32 [#allocation3], 4
      %s20 = int_to_ptr.vmem [resolvable:$true] %s19
      %22 = dma.hbm_to_vmem [thread:$0]  %s18, 256, %s20, [#allocation4]
    $region9: #{tpu_custom_call.1} parent=1 // pred_fallthru
      _
    // Predicated region
    $region10: #{tpu_custom_call.1} parent=1 // pred_check
      _
    $region11: #{tpu_custom_call.1} parent=1 // pred_check_branch
      %24 = sbr.rel (0) target = $region13
    $region12: #{tpu_custom_call.1} parent=1 // pred_region
      %26 = dma.done [#allocation4], 256
    $region13: #{tpu_custom_call.1} parent=1 // pred_fallthru
      _
    %v27 = vld [vmem:[#allocation3] sm:$0xff]
    %v28 = vld [vmem:[#allocation3 + $0x8] sm:$0xff]
    %vm29 = vcmp.ne.f32.partialorder %v27, 0.0
    %vm30 = vcmp.ne.f32.partialorder %v28, 0.0
    %s31 = sld [smem:[#allocation2]]
    %v32 = vstv %s31
    %v33 = vsel %vm29, %v32, 0.0
    %v34 = vsel %vm30, %v32, 0.0
    %35 = vst [vmem:[#allocation6] sm:$0xff] %v33
    %36 = vst [vmem:[#allocation6 + $0x8] sm:$0xff] %v34
    // Predicated region
    $region14: #{tpu_custom_call.1} parent=1 // pred_check
      _
    $region15: #{tpu_custom_call.1} parent=1 // pred_check_branch
      %38 = sbr.rel (0) target = $region17
    $region16: #{tpu_custom_call.1} parent=1 // pred_region
      %40 = vsyncadd [#allocation5], 0
      %s42 = sshll.u32 [#allocation6], 4
      %s43 = int_to_ptr.vmem [resolvable:$true] %s42
      %s44 = sshll.u32 %s2, 4
      %s45 = int_to_ptr.hbm [resolvable:$true] %s44
      %47 = dma.vmem_to_hbm [thread:$0]  %s43, 256, %s45, [#allocation5]
    $region17: #{tpu_custom_call.1} parent=1 // pred_fallthru
      _
    // Predicated region
    $region18: #{tpu_custom_call.1} parent=1 // pred_check
      _
    $region19: #{tpu_custom_call.1} parent=1 // pred_check_branch
      %49 = sbr.rel (0) target = $region21
    $region20: #{tpu_custom_call.1} parent=1 // pred_region
      %51 = dma.done [#allocation5], 256
    $region21: #{tpu_custom_call.1} parent=1 // pred_fallthru
      _
    %52 = vsyncpa [#allocation4], 1
    %53 = vsyncpa [#allocation5], 1

</llo_original>
